<compile_context>
chip_gen: v7x
topology: tpu7x:2x2x1
jax: 0.10.0
libtpu: 0.0.40
codegen_flags: <defaults>
</compile_context>

<pallas_src>
import math

import jax
import jax.numpy as jnp
from jax.experimental import pallas as pl
from jax.experimental.pallas import tpu as pltpu


def _round_up(x, m):
    return (x + m - 1) // m * m


def _sigmoid_via_tanh(x):
    # sigmoid(x) == 0.5 * tanh(x/2) + 0.5 ; tanh runs on the EUP slot.
    return 0.5 * jnp.tanh(0.5 * x) + 0.5


def lltm_kernel(x_ref, c_ref,
                wig_ref, wog_ref, wcd_ref,
                big_ref, bog_ref, bcd_ref,
                new_h_ref, new_c_ref):
    """One batch tile.

    x_ref  : [TB, K]   X = concat([old_h, input], axis=1) tile (K = S + F)
    c_ref  : [TB, S]   old_cell tile
    w*_ref : [K, S]    per-gate weight blocks, already transposed (K-major)
    b*_ref : [1, S]    per-gate bias blocks
    new_h_ref, new_c_ref : [TB, S] outputs
    """
    X = x_ref[...]  # load once, feed all three MXU matmuls

    def gate_pre(w_ref, b_ref):
        return (jnp.dot(X, w_ref[...], preferred_element_type=jnp.float32)
                + b_ref[...])                       # [1,S] bias broadcasts over batch

    input_gate = _sigmoid_via_tanh(gate_pre(wig_ref, big_ref))
    output_gate = _sigmoid_via_tanh(gate_pre(wog_ref, bog_ref))

    pre = gate_pre(wcd_ref, bcd_ref)
    # ELU (alpha=1). Clamp before exp so the unselected branch never produces
    # inf; exp(min(x,0)) - 1 stays within tolerance of expm1 for f32 here.
    candidate_cell = jnp.where(pre > 0, pre, jnp.exp(jnp.minimum(pre, 0.0)) - 1.0)

    new_cell = c_ref[...] + candidate_cell * input_gate
    new_c_ref[...] = new_cell
    new_h_ref[...] = jnp.tanh(new_cell) * output_gate


def lltm_forward(x, weights, bias, old_h, old_cell, *, block_b=512):
    """Pallas LLTM forward. weights: [3S, F+S], bias: [1, 3S]."""
    B, F = x.shape
    S = old_h.shape[1]
    K = S + F
    dtype = jnp.float32

    # ---- host-side layout plumbing (free relative to the kernel) ----------
    # X = concat([old_h, input]) once; pre-transpose + pre-split the weight
    # matrix into per-gate K-major blocks so the kernel feeds the MXU
    # contiguous operands with no transposes / non-aligned slices.
    X = jnp.concatenate([old_h, x], axis=1).astype(dtype)        # [B, K]
    w_t = weights.astype(dtype).T                                # [K, 3S]
    w_ig, w_og, w_cd = w_t[:, 0 * S:1 * S], w_t[:, 1 * S:2 * S], w_t[:, 2 * S:3 * S]
    b = bias.astype(dtype)
    b_ig, b_og, b_cd = b[:, 0 * S:1 * S], b[:, 1 * S:2 * S], b[:, 2 * S:3 * S]

    # ---- batch tiling ------------------------------------------------------
    # Sublane (second-minor) tile dim must be a multiple of 8; pad batch if
    # needed and pick the largest tile that fits comfortably in scoped VMEM
    # (block_b=512 is well within the v7x 32 MiB default budget at f32).
    tb = _round_up(min(block_b, _round_up(B, 8)), 8)
    B_pad = _round_up(B, tb)
    cell = old_cell.astype(dtype)
    if B_pad != B:
        pad = ((0, B_pad - B), (0, 0))
        X = jnp.pad(X, pad)
        cell = jnp.pad(cell, pad)

    grid = (B_pad // tb,)

    def row_spec(width):
        return pl.BlockSpec((tb, width), lambda i: (i, 0))

    def const_spec(shape):
        # Constant index map -> block stays resident in VMEM across grid steps.
        return pl.BlockSpec(shape, lambda i: (0, 0))

    new_h, new_cell = pl.pallas_call(
        lltm_kernel,
        out_shape=(
            jax.ShapeDtypeStruct((B_pad, S), dtype),
            jax.ShapeDtypeStruct((B_pad, S), dtype),
        ),
        grid_spec=pltpu.PrefetchScalarGridSpec(
            num_scalar_prefetch=0,
            grid=grid,
            in_specs=[
                row_spec(K),            # X tile
                row_spec(S),            # old_cell tile
                const_spec((K, S)),     # w_ig (K-major)
                const_spec((K, S)),     # w_og
                const_spec((K, S)),     # w_cd
                const_spec((1, S)),     # b_ig
                const_spec((1, S)),     # b_og
                const_spec((1, S)),     # b_cd
            ],
            out_specs=(row_spec(S), row_spec(S)),
        ),
        compiler_params=pltpu.CompilerParams(
            dimension_semantics=("parallel",),
        ),
    )(X, cell, w_ig, w_og, w_cd, b_ig, b_og, b_cd)

    if B_pad != B:
        new_h = new_h[:B]
        new_cell = new_cell[:B]
    return new_h, new_cell


def lltm_reference(x, weights, bias, old_h, old_cell):
    X = jnp.concatenate([old_h, x], axis=1)
    gates = X @ weights.T + bias
    S = old_h.shape[1]
    ig = jax.nn.sigmoid(gates[:, 0 * S:1 * S])
    og = jax.nn.sigmoid(gates[:, 1 * S:2 * S])
    cand = jax.nn.elu(gates[:, 2 * S:3 * S])
    new_cell = old_cell + cand * ig
    new_h = jnp.tanh(new_cell) * og
    return new_h, new_cell


if __name__ == "__main__":
    # Small shapes consistent with the module's forward:
    batch = 8
    input_features = 32
    state_size = 32

    key = jax.random.PRNGKey(0)
    k_w, k_b, k_x, k_h, k_c = jax.random.split(key, 5)

    # Deterministic init mirroring reset_parameters(): uniform(-stdv, +stdv)
    stdv = 1.0 / math.sqrt(state_size)
    weights = jax.random.uniform(
        k_w, (3 * state_size, input_features + state_size),
        dtype=jnp.float32, minval=-stdv, maxval=stdv)
    bias = jax.random.uniform(
        k_b, (1, 3 * state_size), dtype=jnp.float32, minval=-stdv, maxval=stdv)

    x = jax.random.normal(k_x, (batch, input_features), dtype=jnp.float32)
    old_h = jax.random.normal(k_h, (batch, state_size), dtype=jnp.float32)
    old_cell = jax.random.normal(k_c, (batch, state_size), dtype=jnp.float32)

    new_h, new_cell = lltm_forward(x, weights, bias, old_h, old_cell)
    jax.block_until_ready((new_h, new_cell))

    ref_h, ref_cell = lltm_reference(x, weights, bias, old_h, old_cell)
    assert jnp.allclose(new_h, ref_h, atol=1e-5, rtol=1e-5)
    assert jnp.allclose(new_cell, ref_cell, atol=1e-5, rtol=1e-5)

    print("KERNEL_OK")
</pallas_src>

<mosaic_0001>
module attributes {stable_mosaic.version = 11 : i64} {
  func.func @lltm_kernel(%arg0: i32, %arg1: memref<8x64xf32, #tpu.memory_space<vmem>>, %arg2: memref<8x32xf32, #tpu.memory_space<vmem>>, %arg3: memref<64x32xf32, #tpu.memory_space<vmem>>, %arg4: memref<64x32xf32, #tpu.memory_space<vmem>>, %arg5: memref<64x32xf32, #tpu.memory_space<vmem>>, %arg6: memref<1x32xf32, #tpu.memory_space<vmem>>, %arg7: memref<1x32xf32, #tpu.memory_space<vmem>>, %arg8: memref<1x32xf32, #tpu.memory_space<vmem>>, %arg9: memref<8x32xf32, #tpu.memory_space<vmem>>, %arg10: memref<8x32xf32, #tpu.memory_space<vmem>>) attributes {dimension_semantics = [#tpu.dimension_semantics<parallel>], iteration_bounds = array<i64: 1>, scalar_prefetch = 0 : i64, scratch_operands = 0 : i64, tpu.core_type = #tpu.core_type<tc>, window_params = [{transform_indices = @transform_0, window_bounds = array<i64: 8, 64>}, {transform_indices = @transform_1, window_bounds = array<i64: 8, 32>}, {pipeline_mode = #tpu.pipeline_mode<synchronous>, transform_indices = @transform_2, window_bounds = array<i64: 64, 32>}, {pipeline_mode = #tpu.pipeline_mode<synchronous>, transform_indices = @transform_3, window_bounds = array<i64: 64, 32>}, {pipeline_mode = #tpu.pipeline_mode<synchronous>, transform_indices = @transform_4, window_bounds = array<i64: 64, 32>}, {pipeline_mode = #tpu.pipeline_mode<synchronous>, transform_indices = @transform_5, window_bounds = array<i64: 1, 32>}, {pipeline_mode = #tpu.pipeline_mode<synchronous>, transform_indices = @transform_6, window_bounds = array<i64: 1, 32>}, {pipeline_mode = #tpu.pipeline_mode<synchronous>, transform_indices = @transform_7, window_bounds = array<i64: 1, 32>}, {transform_indices = @transform_8, window_bounds = array<i64: 8, 32>}, {transform_indices = @transform_9, window_bounds = array<i64: 8, 32>}]} {
    %c0 = arith.constant 0 : index
    %c0_0 = arith.constant 0 : index
    %0 = vector.load %arg1[%c0, %c0_0] : memref<8x64xf32, #tpu.memory_space<vmem>>, vector<8x64xf32>
    %c0_1 = arith.constant 0 : index
    %c0_2 = arith.constant 0 : index
    %1 = vector.load %arg3[%c0_1, %c0_2] : memref<64x32xf32, #tpu.memory_space<vmem>>, vector<64x32xf32>
    %cst = arith.constant dense<0.000000e+00> : vector<8x32xf32>
    %2 = tpu.matmul %0, %1, %cst {dimension_numbers = #tpu.dot_dimension_numbers<[1], [0], [0], [1], [0, 0, 1, 1], [], []>} : vector<8x64xf32>, vector<64x32xf32>, vector<8x32xf32> -> vector<8x32xf32>
    %c0_3 = arith.constant 0 : index
    %c0_4 = arith.constant 0 : index
    %3 = vector.load %arg6[%c0_3, %c0_4] : memref<1x32xf32, #tpu.memory_space<vmem>>, vector<1x32xf32>
    %4 = vector.broadcast %3 : vector<1x32xf32> to vector<8x32xf32>
    %5 = arith.addf %2, %4 : vector<8x32xf32>
    %cst_5 = arith.constant 5.000000e-01 : f32
    %6 = vector.broadcast %cst_5 : f32 to vector<8x32xf32>
    %7 = arith.mulf %6, %5 : vector<8x32xf32>
    %8 = math.tanh %7 : vector<8x32xf32>
    %cst_6 = arith.constant 5.000000e-01 : f32
    %9 = vector.broadcast %cst_6 : f32 to vector<8x32xf32>
    %10 = arith.mulf %9, %8 : vector<8x32xf32>
    %cst_7 = arith.constant 5.000000e-01 : f32
    %11 = vector.broadcast %cst_7 : f32 to vector<8x32xf32>
    %12 = arith.addf %10, %11 : vector<8x32xf32>
    %c0_8 = arith.constant 0 : index
    %c0_9 = arith.constant 0 : index
    %13 = vector.load %arg4[%c0_8, %c0_9] : memref<64x32xf32, #tpu.memory_space<vmem>>, vector<64x32xf32>
    %cst_10 = arith.constant dense<0.000000e+00> : vector<8x32xf32>
    %14 = tpu.matmul %0, %13, %cst_10 {dimension_numbers = #tpu.dot_dimension_numbers<[1], [0], [0], [1], [0, 0, 1, 1], [], []>} : vector<8x64xf32>, vector<64x32xf32>, vector<8x32xf32> -> vector<8x32xf32>
    %c0_11 = arith.constant 0 : index
    %c0_12 = arith.constant 0 : index
    %15 = vector.load %arg7[%c0_11, %c0_12] : memref<1x32xf32, #tpu.memory_space<vmem>>, vector<1x32xf32>
    %16 = vector.broadcast %15 : vector<1x32xf32> to vector<8x32xf32>
    %17 = arith.addf %14, %16 : vector<8x32xf32>
    %cst_13 = arith.constant 5.000000e-01 : f32
    %18 = vector.broadcast %cst_13 : f32 to vector<8x32xf32>
    %19 = arith.mulf %18, %17 : vector<8x32xf32>
    %20 = math.tanh %19 : vector<8x32xf32>
    %cst_14 = arith.constant 5.000000e-01 : f32
    %21 = vector.broadcast %cst_14 : f32 to vector<8x32xf32>
    %22 = arith.mulf %21, %20 : vector<8x32xf32>
    %cst_15 = arith.constant 5.000000e-01 : f32
    %23 = vector.broadcast %cst_15 : f32 to vector<8x32xf32>
    %24 = arith.addf %22, %23 : vector<8x32xf32>
    %c0_16 = arith.constant 0 : index
    %c0_17 = arith.constant 0 : index
    %25 = vector.load %arg5[%c0_16, %c0_17] : memref<64x32xf32, #tpu.memory_space<vmem>>, vector<64x32xf32>
    %cst_18 = arith.constant dense<0.000000e+00> : vector<8x32xf32>
    %26 = tpu.matmul %0, %25, %cst_18 {dimension_numbers = #tpu.dot_dimension_numbers<[1], [0], [0], [1], [0, 0, 1, 1], [], []>} : vector<8x64xf32>, vector<64x32xf32>, vector<8x32xf32> -> vector<8x32xf32>
    %c0_19 = arith.constant 0 : index
    %c0_20 = arith.constant 0 : index
    %27 = vector.load %arg8[%c0_19, %c0_20] : memref<1x32xf32, #tpu.memory_space<vmem>>, vector<1x32xf32>
    %28 = vector.broadcast %27 : vector<1x32xf32> to vector<8x32xf32>
    %29 = arith.addf %26, %28 : vector<8x32xf32>
    %cst_21 = arith.constant 0.000000e+00 : f32
    %30 = vector.broadcast %cst_21 : f32 to vector<8x32xf32>
    %31 = arith.cmpf ogt, %29, %30 : vector<8x32xf32>
    %cst_22 = arith.constant 0.000000e+00 : f32
    %32 = vector.broadcast %cst_22 : f32 to vector<8x32xf32>
    %33 = arith.minimumf %29, %32 : vector<8x32xf32>
    %34 = math.exp %33 : vector<8x32xf32>
    %cst_23 = arith.constant 1.000000e+00 : f32
    %35 = vector.broadcast %cst_23 : f32 to vector<8x32xf32>
    %36 = arith.subf %34, %35 : vector<8x32xf32>
    %37 = arith.select %31, %29, %36 : vector<8x32xi1>, vector<8x32xf32>
    %c0_24 = arith.constant 0 : index
    %c0_25 = arith.constant 0 : index
    %38 = vector.load %arg2[%c0_24, %c0_25] : memref<8x32xf32, #tpu.memory_space<vmem>>, vector<8x32xf32>
    %39 = arith.mulf %37, %12 : vector<8x32xf32>
    %40 = arith.addf %38, %39 : vector<8x32xf32>
    %c0_26 = arith.constant 0 : index
    %c0_27 = arith.constant 0 : index
    %41 = vector.load %arg10[%c0_26, %c0_27] : memref<8x32xf32, #tpu.memory_space<vmem>>, vector<8x32xf32>
    tpu.vector_store %arg10[%c0_26, %c0_27], %40 {strides = array<i32>} : memref<8x32xf32, #tpu.memory_space<vmem>>, vector<8x32xf32>,
    %42 = math.tanh %40 : vector<8x32xf32>
    %43 = arith.mulf %42, %24 : vector<8x32xf32>
    %c0_28 = arith.constant 0 : index
    %c0_29 = arith.constant 0 : index
    %44 = vector.load %arg9[%c0_28, %c0_29] : memref<8x32xf32, #tpu.memory_space<vmem>>, vector<8x32xf32>
    tpu.vector_store %arg9[%c0_28, %c0_29], %43 {strides = array<i32>} : memref<8x32xf32, #tpu.memory_space<vmem>>, vector<8x32xf32>,
    return
  }
  func.func @transform_0(%arg0: i32) -> (i32, i32) {
    %c0_i32 = arith.constant 0 : i32
    %c0_i32_0 = arith.constant 0 : i32
    return %arg0, %c0_i32 : i32, i32
  }
  func.func @transform_1(%arg0: i32) -> (i32, i32) {
    %c0_i32 = arith.constant 0 : i32
    %c0_i32_0 = arith.constant 0 : i32
    return %arg0, %c0_i32 : i32, i32
  }
  func.func @transform_2(%arg0: i32) -> (i32, i32) {
    %c0_i32 = arith.constant 0 : i32
    %c0_i32_0 = arith.constant 0 : i32
    %c0_i32_1 = arith.constant 0 : i32
    return %c0_i32, %c0_i32_0 : i32, i32
  }
  func.func @transform_3(%arg0: i32) -> (i32, i32) {
    %c0_i32 = arith.constant 0 : i32
    %c0_i32_0 = arith.constant 0 : i32
    %c0_i32_1 = arith.constant 0 : i32
    return %c0_i32, %c0_i32_0 : i32, i32
  }
  func.func @transform_4(%arg0: i32) -> (i32, i32) {
    %c0_i32 = arith.constant 0 : i32
    %c0_i32_0 = arith.constant 0 : i32
    %c0_i32_1 = arith.constant 0 : i32
    return %c0_i32, %c0_i32_0 : i32, i32
  }
  func.func @transform_5(%arg0: i32) -> (i32, i32) {
    %c0_i32 = arith.constant 0 : i32
    %c0_i32_0 = arith.constant 0 : i32
    %c0_i32_1 = arith.constant 0 : i32
    return %c0_i32, %c0_i32_0 : i32, i32
  }
  func.func @transform_6(%arg0: i32) -> (i32, i32) {
    %c0_i32 = arith.constant 0 : i32
    %c0_i32_0 = arith.constant 0 : i32
    %c0_i32_1 = arith.constant 0 : i32
    return %c0_i32, %c0_i32_0 : i32, i32
  }
  func.func @transform_7(%arg0: i32) -> (i32, i32) {
    %c0_i32 = arith.constant 0 : i32
    %c0_i32_0 = arith.constant 0 : i32
    %c0_i32_1 = arith.constant 0 : i32
    return %c0_i32, %c0_i32_0 : i32, i32
  }
  func.func @transform_8(%arg0: i32) -> (i32, i32) {
    %c0_i32 = arith.constant 0 : i32
    %c0_i32_0 = arith.constant 0 : i32
    return %arg0, %c0_i32 : i32, i32
  }
  func.func @transform_9(%arg0: i32) -> (i32, i32) {
    %c0_i32 = arith.constant 0 : i32
    %c0_i32_0 = arith.constant 0 : i32
    return %arg0, %c0_i32 : i32, i32
  }
}

</mosaic_0001>

<llo_original>
// kernel: tpu_custom_call.1
$region0: #{tpu_custom_call.1}
  #allocation0 [shape = 'u32[]', space=smem, size = 0x4, offset = 0x4, fixed_abs, tag = 'smem constant byte address 0x4 - core index']
  #allocation1 [shape = 'u32[144,128]{1,0:T(1,128)}', space=vmem, size = 0x12000, scoped, tag = 'internal scratch']
  %s0 = inlined_call_operand.vmem [shape: f32[8,64], index: 0, kind: input, shape index: {}]
  %s1 = inlined_call_operand.vmem [shape: f32[8,32], index: 1, kind: input, shape index: {}]
  %s2 = inlined_call_operand.vmem [shape: f32[64,32], index: 2, kind: input, shape index: {}]
  %s3 = inlined_call_operand.vmem [shape: f32[64,32], index: 3, kind: input, shape index: {}]
  %s4 = inlined_call_operand.vmem [shape: f32[64,32], index: 4, kind: input, shape index: {}]
  %s5 = inlined_call_operand.vmem [shape: f32[1,32], index: 5, kind: input, shape index: {}]
  %s6 = inlined_call_operand.vmem [shape: f32[1,32], index: 6, kind: input, shape index: {}]
  %s7 = inlined_call_operand.vmem [shape: f32[1,32], index: 7, kind: input, shape index: {}]
  %s8 = inlined_call_operand.hbm [shape: f32[8,32], index: 8, kind: output, shape index: {0}]
  %s9 = inlined_call_operand.hbm [shape: f32[8,32], index: 9, kind: output, shape index: {1}]
  %10 = xla_tuple %s8, %s9
  %s11 = sld [smem:[#allocation0]]
  $region50: #{tpu_custom_call.1} parent=0
    _
  %s13 = ssub.s32 1, %s11
  %s14 = scalar_select 0, %s13, %s11
  $region1: #{tpu_custom_call.1} parent=0
    #allocation2 [shape = 'u8[4096]{0}', space=vmem, size = 0x1000, scoped, tag = 'output window, operand 0, single buffered']
    #allocation3 [shape = 's32[1]{0}', space=sflag, size = 0x4, scoped, tag = 'scoped memory for tpu_custom_call.1']
    #allocation4 [shape = 'u8[4096]{0}', space=vmem, size = 0x1000, scoped, tag = 'output window, operand 1, single buffered']
    #allocation5 [shape = 's32[1]{0}', space=sflag, size = 0x4, scoped, tag = 'scoped memory for tpu_custom_call.1']
    %15 = vsyncpa [#allocation3], 0
    %16 = vsyncpa [#allocation5], 0
    // Predicated region
    $region2: #{tpu_custom_call.1} parent=1 // pred_check
      _
    $region3: #{tpu_custom_call.1} parent=1 // pred_check_branch
      %18 = sbr.rel (0) target = $region5
    $region4: #{tpu_custom_call.1} parent=1 // pred_region
      _
    $region5: #{tpu_custom_call.1} parent=1 // pred_fallthru
      _
    // Predicated region
    $region6: #{tpu_custom_call.1} parent=1 // pred_check
      _
    $region7: #{tpu_custom_call.1} parent=1 // pred_check_branch
      %20 = sbr.rel (0) target = $region9
    $region8: #{tpu_custom_call.1} parent=1 // pred_region
      _
    $region9: #{tpu_custom_call.1} parent=1 // pred_fallthru
      _
    // Predicated region
    $region10: #{tpu_custom_call.1} parent=1 // pred_check
      _
    $region11: #{tpu_custom_call.1} parent=1 // pred_check_branch
      %22 = sbr.rel (0) target = $region13
    $region12: #{tpu_custom_call.1} parent=1 // pred_region
      _
    $region13: #{tpu_custom_call.1} parent=1 // pred_fallthru
      _
    // Predicated region
    $region14: #{tpu_custom_call.1} parent=1 // pred_check
      _
    $region15: #{tpu_custom_call.1} parent=1 // pred_check_branch
      %24 = sbr.rel (0) target = $region17
    $region16: #{tpu_custom_call.1} parent=1 // pred_region
      _
    $region17: #{tpu_custom_call.1} parent=1 // pred_fallthru
      _
    // Predicated region
    $region18: #{tpu_custom_call.1} parent=1 // pred_check
      _
    $region19: #{tpu_custom_call.1} parent=1 // pred_check_branch
      %26 = sbr.rel (0) target = $region21
    $region20: #{tpu_custom_call.1} parent=1 // pred_region
      _
    $region21: #{tpu_custom_call.1} parent=1 // pred_fallthru
      _
    // Predicated region
    $region22: #{tpu_custom_call.1} parent=1 // pred_check
      _
    $region23: #{tpu_custom_call.1} parent=1 // pred_check_branch
      %28 = sbr.rel (0) target = $region25
    $region24: #{tpu_custom_call.1} parent=1 // pred_region
      _
    $region25: #{tpu_custom_call.1} parent=1 // pred_fallthru
      _
    // Predicated region
    $region26: #{tpu_custom_call.1} parent=1 // pred_check
      _
    $region27: #{tpu_custom_call.1} parent=1 // pred_check_branch
      %30 = sbr.rel (0) target = $region29
    $region28: #{tpu_custom_call.1} parent=1 // pred_region
      _
    $region29: #{tpu_custom_call.1} parent=1 // pred_fallthru
      _
    // Predicated region
    $region30: #{tpu_custom_call.1} parent=1 // pred_check
      _
    $region31: #{tpu_custom_call.1} parent=1 // pred_check_branch
      %32 = sbr.rel (0) target = $region33
    $region32: #{tpu_custom_call.1} parent=1 // pred_region
      _
    $region33: #{tpu_custom_call.1} parent=1 // pred_fallthru
      _
    %v33 = vld [vmem:[%s0] sm:$0xff]
    %v34 = vld [vmem:[%s2] sm:$0xff]
    %v35 = vld [vmem:[%s2 + $0x8] sm:$0xff]
    %v36 = vld [vmem:[%s2 + $0x10] sm:$0xff]
    %v37 = vld [vmem:[%s2 + $0x18] sm:$0xff]
    %v38 = vld [vmem:[%s2 + $0x20] sm:$0xff]
    %v39 = vld [vmem:[%s2 + $0x28] sm:$0xff]
    %v40 = vld [vmem:[%s2 + $0x30] sm:$0xff]
    %v41 = vld [vmem:[%s2 + $0x38] sm:$0xff]
    %v42 = vld [vmem:[%s5] sm:$0x1]
    %v44 = vlaneseq
    %v45 = vshrl.u32 %v44, 7
    %v46 = vsub.s32 0, %v45
    %v47 = vrot.slane %v42, %v46
    %vm49 = vcmask 523264
    %v51 = vsel %vm49, %v33, 0
    %53 = vmatprep.subr.mxu0 0.0
    %54 = vmatpush1.msra.mxu0 %v34
    %55 = vmatprep.subr.mxu0 0.0
    %56 = vmatpush1.msra.mxu0 %v35
    %57 = vmatprep.subr.mxu0 0.0
    %58 = vmatpush1.msra.mxu0 %v36
    %59 = vmatprep.subr.mxu0 0.0
    %60 = vmatpush1.msra.mxu0 %v37
    %61 = vmatprep.subr.mxu0 0.0
    %62 = vmatpush1.msra.mxu0 %v38
    %63 = vmatprep.subr.mxu0 0.0
    %64 = vmatpush1.msra.mxu0 %v39
    %65 = vmatprep.subr.mxu0 0.0
    %66 = vmatpush1.msra.mxu0 %v40
    %67 = vmatprep.subr.mxu0 0.0
    %68 = vmatpush1.msra.mxu0 %v41
    %69 = vmatprep.subr.mxu0 0.0
    %70 = vmatpush1.msra.mxu0 0.0
    %71 = vmatprep.subr.mxu0 0.0
    %72 = vmatpush1.msra.mxu0 0.0
    %73 = vmatprep.subr.mxu0 0.0
    %74 = vmatpush1.msra.mxu0 0.0
    %75 = vmatprep.subr.mxu0 0.0
    %76 = vmatpush1.msra.mxu0 0.0
    %77 = vmatprep.subr.mxu0 0.0
    %78 = vmatpush1.msra.mxu0 0.0
    %79 = vmatprep.subr.mxu0 0.0
    %80 = vmatpush1.msra.mxu0 0.0
    %81 = vmatprep.subr.mxu0 0.0
    %82 = vmatpush1.msra.mxu0 0.0
    %83 = vmatprep.subr.mxu0 0.0
    %84 = vmatpush1.msra.mxu0 0.0
    %85 = vmatprep.subr.mxu0 0.0
    %86 = vmatpush1.msra.mxu0 0.0
    %87 = vmatprep.subr.mxu0 0.0
    %88 = vmatpush1.msra.mxu0 0.0
    %89 = vmatprep.subr.mxu0 0.0
    %90 = vmatpush1.msra.mxu0 0.0
    %91 = vmatprep.subr.mxu0 0.0
    %92 = vmatpush1.msra.mxu0 0.0
    %93 = vmatprep.subr.mxu0 0.0
    %94 = vmatpush1.msra.mxu0 0.0
    %95 = vmatprep.subr.mxu0 0.0
    %96 = vmatpush1.msra.mxu0 0.0
    %97 = vmatprep.subr.mxu0 0.0
    %98 = vmatpush1.msra.mxu0 0.0
    %99 = vmatprep.subr.mxu0 0.0
    %100 = vmatpush1.msra.mxu0 0.0
    %101 = vmatprep.subr.mxu0 0.0
    %102 = vmatpush1.msra.mxu0 0.0
    %103 = vmatprep.subr.mxu0 0.0
    %104 = vmatpush1.msra.mxu0 0.0
    %105 = vmatprep.subr.mxu0 0.0
    %106 = vmatpush1.msra.mxu0 0.0
    %107 = vmatprep.subr.mxu0 0.0
    %108 = vmatpush1.msra.mxu0 0.0
    %109 = vmatprep.subr.mxu0 0.0
    %110 = vmatpush1.msra.mxu0 0.0
    %111 = vmatprep.subr.mxu0 0.0
    %112 = vmatpush1.msra.mxu0 0.0
    %113 = vmatprep.subr.mxu0 0.0
    %114 = vmatpush1.msra.mxu0 0.0
    %115 = vmatprep.subr.mxu0 0.0
    %116 = vmatpush1.msra.mxu0 0.0
    %117 = vmatprep.mubr.f32.mxu0 0.0
    %118 = vmatmul.mubr.f32.gmra.mrb[0].mxu0 %v51
    %v119 = vpop.f32.mrb[0].mxu0
    %v120 = vadd.f32 %v47, %v119
    %v121 = vpop.f32.mrb[0].mxu0
    %122 = vdwg.mxu0
    %v123 = vmul.f32 %v120, 0.5
    %v124 = vtanh.pop %v123
    %v125 = vmul.f32 %v124, 0.5
    %v126 = vadd.f32 %v125, 0.5
    %v127 = vld [vmem:[%s3] sm:$0xff]
    %v128 = vld [vmem:[%s3 + $0x8] sm:$0xff]
    %v129 = vld [vmem:[%s3 + $0x10] sm:$0xff]
    %v130 = vld [vmem:[%s3 + $0x18] sm:$0xff]
    %v131 = vld [vmem:[%s3 + $0x20] sm:$0xff]
    %v132 = vld [vmem:[%s3 + $0x28] sm:$0xff]
    %v133 = vld [vmem:[%s3 + $0x30] sm:$0xff]
    %v134 = vld [vmem:[%s3 + $0x38] sm:$0xff]
    %v135 = vld [vmem:[%s6] sm:$0x1]
    %v137 = vlaneseq
    %v138 = vshrl.u32 %v137, 7
    %v139 = vsub.s32 0, %v138
    %v140 = vrot.slane %v135, %v139
    %142 = vmatprep.subr.mxu0 0.0
    %143 = vmatpush1.msra.mxu0 %v127
    %144 = vmatprep.subr.mxu0 0.0
    %145 = vmatpush1.msra.mxu0 %v128
    %146 = vmatprep.subr.mxu0 0.0
    %147 = vmatpush1.msra.mxu0 %v129
    %148 = vmatprep.subr.mxu0 0.0
    %149 = vmatpush1.msra.mxu0 %v130
    %150 = vmatprep.subr.mxu0 0.0
    %151 = vmatpush1.msra.mxu0 %v131
    %152 = vmatprep.subr.mxu0 0.0
    %153 = vmatpush1.msra.mxu0 %v132
    %154 = vmatprep.subr.mxu0 0.0
    %155 = vmatpush1.msra.mxu0 %v133
    %156 = vmatprep.subr.mxu0 0.0
    %157 = vmatpush1.msra.mxu0 %v134
    %158 = vmatprep.subr.mxu0 0.0
    %159 = vmatpush1.msra.mxu0 0.0
    %160 = vmatprep.subr.mxu0 0.0
    %161 = vmatpush1.msra.mxu0 0.0
    %162 = vmatprep.subr.mxu0 0.0
    %163 = vmatpush1.msra.mxu0 0.0
    %164 = vmatprep.subr.mxu0 0.0
    %165 = vmatpush1.msra.mxu0 0.0
    %166 = vmatprep.subr.mxu0 0.0
    %167 = vmatpush1.msra.mxu0 0.0
    %168 = vmatprep.subr.mxu0 0.0
    %169 = vmatpush1.msra.mxu0 0.0
    %170 = vmatprep.subr.mxu0 0.0
    %171 = vmatpush1.msra.mxu0 0.0
    %172 = vmatprep.subr.mxu0 0.0
    %173 = vmatpush1.msra.mxu0 0.0
    %174 = vmatprep.subr.mxu0 0.0
    %175 = vmatpush1.msra.mxu0 0.0
    %176 = vmatprep.subr.mxu0 0.0
    %177 = vmatpush1.msra.mxu0 0.0
    %178 = vmatprep.subr.mxu0 0.0
    %179 = vmatpush1.msra.mxu0 0.0
    %180 = vmatprep.subr.mxu0 0.0
    %181 = vmatpush1.msra.mxu0 0.0
    %182 = vmatprep.subr.mxu0 0.0
    %183 = vmatpush1.msra.mxu0 0.0
    %184 = vmatprep.subr.mxu0 0.0
    %185 = vmatpush1.msra.mxu0 0.0
    %186 = vmatprep.subr.mxu0 0.0
    %187 = vmatpush1.msra.mxu0 0.0
    %188 = vmatprep.subr.mxu0 0.0
    %189 = vmatpush1.msra.mxu0 0.0
    %190 = vmatprep.subr.mxu0 0.0
    %191 = vmatpush1.msra.mxu0 0.0
    %192 = vmatprep.subr.mxu0 0.0
    %193 = vmatpush1.msra.mxu0 0.0
    %194 = vmatprep.subr.mxu0 0.0
    %195 = vmatpush1.msra.mxu0 0.0
    %196 = vmatprep.subr.mxu0 0.0
    %197 = vmatpush1.msra.mxu0 0.0
    %198 = vmatprep.subr.mxu0 0.0
    %199 = vmatpush1.msra.mxu0 0.0
    %200 = vmatprep.subr.mxu0 0.0
    %201 = vmatpush1.msra.mxu0 0.0
    %202 = vmatprep.subr.mxu0 0.0
    %203 = vmatpush1.msra.mxu0 0.0
    %204 = vmatprep.subr.mxu0 0.0
    %205 = vmatpush1.msra.mxu0 0.0
    %206 = vmatprep.mubr.f32.mxu0 0.0
    %207 = vmatmul.mubr.f32.gmra.mrb[0].mxu0 %v51
    %v208 = vpop.f32.mrb[0].mxu0
    %v209 = vadd.f32 %v140, %v208
    %v210 = vpop.f32.mrb[0].mxu0
    %211 = vdwg.mxu0
    %v212 = vmul.f32 %v209, 0.5
    %v213 = vtanh.pop %v212
    %v214 = vmul.f32 %v213, 0.5
    %v215 = vadd.f32 %v214, 0.5
    %v216 = vld [vmem:[%s4] sm:$0xff]
    %v217 = vld [vmem:[%s4 + $0x8] sm:$0xff]
    %v218 = vld [vmem:[%s4 + $0x10] sm:$0xff]
    %v219 = vld [vmem:[%s4 + $0x18] sm:$0xff]
    %v220 = vld [vmem:[%s4 + $0x20] sm:$0xff]
    %v221 = vld [vmem:[%s4 + $0x28] sm:$0xff]
    %v222 = vld [vmem:[%s4 + $0x30] sm:$0xff]
    %v223 = vld [vmem:[%s4 + $0x38] sm:$0xff]
    %v224 = vld [vmem:[%s7] sm:$0x1]
    %v226 = vlaneseq
    %v227 = vshrl.u32 %v226, 7
    %v228 = vsub.s32 0, %v227
    %v229 = vrot.slane %v224, %v228
    %231 = vmatprep.subr.mxu0 0.0
    %232 = vmatpush1.msra.mxu0 %v216
    %233 = vmatprep.subr.mxu0 0.0
    %234 = vmatpush1.msra.mxu0 %v217
    %235 = vmatprep.subr.mxu0 0.0
    %236 = vmatpush1.msra.mxu0 %v218
    %237 = vmatprep.subr.mxu0 0.0
    %238 = vmatpush1.msra.mxu0 %v219
    %239 = vmatprep.subr.mxu0 0.0
    %240 = vmatpush1.msra.mxu0 %v220
    %241 = vmatprep.subr.mxu0 0.0
    %242 = vmatpush1.msra.mxu0 %v221
    %243 = vmatprep.subr.mxu0 0.0
    %244 = vmatpush1.msra.mxu0 %v222
    %245 = vmatprep.subr.mxu0 0.0
    %246 = vmatpush1.msra.mxu0 %v223
    %247 = vmatprep.subr.mxu0 0.0
    %248 = vmatpush1.msra.mxu0 0.0
    %249 = vmatprep.subr.mxu0 0.0
    %250 = vmatpush1.msra.mxu0 0.0
    %251 = vmatprep.subr.mxu0 0.0
    %252 = vmatpush1.msra.mxu0 0.0
    %253 = vmatprep.subr.mxu0 0.0
    %254 = vmatpush1.msra.mxu0 0.0
    %255 = vmatprep.subr.mxu0 0.0
    %256 = vmatpush1.msra.mxu0 0.0
    %257 = vmatprep.subr.mxu0 0.0
    %258 = vmatpush1.msra.mxu0 0.0
    %259 = vmatprep.subr.mxu0 0.0
    %260 = vmatpush1.msra.mxu0 0.0
    %261 = vmatprep.subr.mxu0 0.0
    %262 = vmatpush1.msra.mxu0 0.0
    %263 = vmatprep.subr.mxu0 0.0
    %264 = vmatpush1.msra.mxu0 0.0
    %265 = vmatprep.subr.mxu0 0.0
    %266 = vmatpush1.msra.mxu0 0.0
    %267 = vmatprep.subr.mxu0 0.0
    %268 = vmatpush1.msra.mxu0 0.0
    %269 = vmatprep.subr.mxu0 0.0
    %270 = vmatpush1.msra.mxu0 0.0
    %271 = vmatprep.subr.mxu0 0.0
    %272 = vmatpush1.msra.mxu0 0.0
    %273 = vmatprep.subr.mxu0 0.0
    %274 = vmatpush1.msra.mxu0 0.0
    %275 = vmatprep.subr.mxu0 0.0
    %276 = vmatpush1.msra.mxu0 0.0
    %277 = vmatprep.subr.mxu0 0.0
    %278 = vmatpush1.msra.mxu0 0.0
    %279 = vmatprep.subr.mxu0 0.0
    %280 = vmatpush1.msra.mxu0 0.0
    %281 = vmatprep.subr.mxu0 0.0
    %282 = vmatpush1.msra.mxu0 0.0
    %283 = vmatprep.subr.mxu0 0.0
    %284 = vmatpush1.msra.mxu0 0.0
    %285 = vmatprep.subr.mxu0 0.0
    %286 = vmatpush1.msra.mxu0 0.0
    %287 = vmatprep.subr.mxu0 0.0
    %288 = vmatpush1.msra.mxu0 0.0
    %289 = vmatprep.subr.mxu0 0.0
    %290 = vmatpush1.msra.mxu0 0.0
    %291 = vmatprep.subr.mxu0 0.0
    %292 = vmatpush1.msra.mxu0 0.0
    %293 = vmatprep.subr.mxu0 0.0
    %294 = vmatpush1.msra.mxu0 0.0
    %295 = vmatprep.mubr.f32.mxu0 0.0
    %296 = vmatmul.mubr.f32.gmra.mrb[0].mxu0 %v51
    %v297 = vpop.f32.mrb[0].mxu0
    %v298 = vadd.f32 %v229, %v297
    %v299 = vpop.f32.mrb[0].mxu0
    %300 = vdwg.mxu0
    %vm301 = vcmp.gt.f32.partialorder %v298, 0.0
    %v302 = vmin.f32 %v298, 0.0
    %v303 = vmul.f32 %v302, 1.442695
    %v304 = vpow.pop %v303
    %v305 = vsub.f32 %v304, 1.0
    %v306 = vsel %vm301, %v298, %v305
    %v307 = vld [vmem:[%s1] sm:$0xff]
    %v308 = vmul.f32 %v306, %v126
    %v309 = vadd.f32 %v307, %v308
    %vm310 = vcmask 261120
    %311 = vst.msk [vmem:[#allocation4] sm:$0xff] %vm310, %v309
    %v312 = vtanh.pop %v309
    %v313 = vmul.f32 %v312, %v215
    %314 = vst.msk [vmem:[#allocation2] sm:$0xff] %vm310, %v313
    // Predicated region
    $region34: #{tpu_custom_call.1} parent=1 // pred_check
      _
    $region35: #{tpu_custom_call.1} parent=1 // pred_check_branch
      %316 = sbr.rel (0) target = $region37
    $region36: #{tpu_custom_call.1} parent=1 // pred_region
      %s318 = ssub.s32 128, 128
      %319 = vsyncadd [#allocation3], %s318
      %s321 = sshll.u32 [#allocation2], 4
      %s322 = int_to_ptr.vmem [resolvable:$true] %s321
      %324 = dma.vmem_to_hbm [thread:$0]  %s322, 128, %s8, [#allocation3]
    $region37: #{tpu_custom_call.1} parent=1 // pred_fallthru
      _
    // Predicated region
    $region38: #{tpu_custom_call.1} parent=1 // pred_check
      _
    $region39: #{tpu_custom_call.1} parent=1 // pred_check_branch
      %326 = sbr.rel (0) target = $region41
    $region40: #{tpu_custom_call.1} parent=1 // pred_region
      %s328 = ssub.s32 128, 128
      %329 = vsyncadd [#allocation5], %s328
      %s331 = sshll.u32 [#allocation4], 4
      %s332 = int_to_ptr.vmem [resolvable:$true] %s331
      %334 = dma.vmem_to_hbm [thread:$0]  %s332, 128, %s9, [#allocation5]
    $region41: #{tpu_custom_call.1} parent=1 // pred_fallthru
      _
    // Predicated region
    $region42: #{tpu_custom_call.1} parent=1 // pred_check
      _
    $region43: #{tpu_custom_call.1} parent=1 // pred_check_branch
      %336 = sbr.rel (0) target = $region45
    $region44: #{tpu_custom_call.1} parent=1 // pred_region
      %337 = dma.done [#allocation3], 128
    $region45: #{tpu_custom_call.1} parent=1 // pred_fallthru
      _
    // Predicated region
    $region46: #{tpu_custom_call.1} parent=1 // pred_check
      _
    $region47: #{tpu_custom_call.1} parent=1 // pred_check_branch
      %339 = sbr.rel (0) target = $region49
    $region48: #{tpu_custom_call.1} parent=1 // pred_region
      %340 = dma.done [#allocation5], 128
    $region49: #{tpu_custom_call.1} parent=1 // pred_fallthru
      _
    %341 = vsyncpa [#allocation3], 1
    %342 = vsyncpa [#allocation5], 1

</llo_original>
